<compile_context>
chip_gen: v5e
topology: v5e:2x2
jax: 0.10.0
libtpu: 0.0.40
codegen_flags: <defaults>
</compile_context>

<pallas_src>
import jax
import jax.numpy as jnp
from jax.experimental import pallas as pl
from jax.experimental.pallas import tpu as pltpu


def mlp_softmax_kernel(x_ref, w1_ref, b1_ref, w2_ref, b2_ref, w3_ref, b3_ref,
                       o_ref):
    """Fused MLP + ReLU + softmax over one batch tile.

    Matmul operands are bf16 (MXU), accumulation and all VPU/EUP work is f32
    (v5e has no bf16 VALU/EUP, so the elementwise path stays f32 everywhere).
    """
    x = x_ref[...]                                               # (tb, in) bf16

    # fc1 + ReLU
    h1 = jnp.dot(x, w1_ref[...], preferred_element_type=jnp.float32)
    h1 = jnp.maximum(h1 + b1_ref[...], 0.0)

    # fc2 + ReLU
    h2 = jnp.dot(h1.astype(jnp.bfloat16), w2_ref[...],
                 preferred_element_type=jnp.float32)
    h2 = jnp.maximum(h2 + b2_ref[...], 0.0)

    # fc3 -> logits
    logits = jnp.dot(h2.astype(jnp.bfloat16), w3_ref[...],
                     preferred_element_type=jnp.float32)
    logits = logits + b3_ref[...]

    # softmax over the action dimension (dim=1 in the PyTorch module).
    # Exact divide so every row sums to 1 to float precision (safe to sample).
    m = jnp.max(logits, axis=-1, keepdims=True)
    e = jnp.exp(logits - m)
    denom = jnp.sum(e, axis=-1, keepdims=True)
    o_ref[...] = (e / denom).astype(o_ref.dtype)


def network_forward(x, w1, b1, w2, b2, w3, b3, *, num_batch_tiles=2,
                    max_batch_tile=8192):
    """Batch-tiled forward pass; weights/biases stay fully VMEM-resident.

    Tile policy: as few grid steps as possible (per-step pipeline overhead
    ~0.35 us dominates the ~MFLOP of work here), but keep up to 2 tiles so the
    "parallel" batch axis can shard across v7x's 2 TensorCores.  The tile is
    capped so double-buffered bf16 activations stay tiny vs v7x's 64 MiB VMEM.
    """
    batch, in_size = x.shape
    h1 = w1.shape[1]
    h2 = w2.shape[1]
    out_size = w3.shape[1]

    tb = -(-batch // num_batch_tiles)          # cdiv
    tb = min(tb, max_batch_tile)
    tb = max(8, -(-tb // 8) * 8)               # sublane multiple of 8
    grid = pl.cdiv(batch, tb)

    # bf16 matmul operands; biases stay f32 (added after f32 accumulation).
    xb = x.astype(jnp.bfloat16)
    w1b = w1.astype(jnp.bfloat16)
    w2b = w2.astype(jnp.bfloat16)
    w3b = w3.astype(jnp.bfloat16)

    full = lambda i: (0, 0)   # weights/biases: same block every grid step
    tile = lambda i: (i, 0)   # activations: walk the batch

    flops = 2 * batch * (in_size * h1 + h1 * h2 + h2 * out_size)
    bytes_accessed = (batch * in_size * 2                     # x (bf16)
                      + batch * out_size * 4                  # probs (f32)
                      + (in_size * h1 + h1 * h2 + h2 * out_size) * 2
                      + (h1 + h2 + out_size) * 4)

    # NOTE: if tb does not divide batch, the last tile reads OOB rows (garbage,
    # possibly inf/NaN after exp).  Softmax is row-wise and OOB output rows are
    # masked on writeback, so valid rows are unaffected; no jnp.pad copy needed.
    out = pl.pallas_call(
        mlp_softmax_kernel,
        out_shape=jax.ShapeDtypeStruct((batch, out_size), jnp.float32),
        grid=(grid,),
        in_specs=[
            pl.BlockSpec((tb, in_size), tile),
            pl.BlockSpec((in_size, h1), full),
            pl.BlockSpec((1, h1), full),
            pl.BlockSpec((h1, h2), full),
            pl.BlockSpec((1, h2), full),
            pl.BlockSpec((h2, out_size), full),
            pl.BlockSpec((1, out_size), full),
        ],
        # TODO(synk): out last dim is 4 (<128 lanes) -> masked vst.msk stores;
        # negligible at out_size=4, pack lane-dense if reused with many actions.
        out_specs=pl.BlockSpec((tb, out_size), tile),
        compiler_params=pltpu.CompilerParams(
            dimension_semantics=("parallel",)),
        cost_estimate=pl.CostEstimate(
            flops=flops,
            transcendentals=batch * out_size,
            bytes_accessed=bytes_accessed),
    )(xb, w1b, b1, w2b, b2, w3b, b3)
    return out


def init_params(key, input_size=64, hidden1=64, hidden2=32, output_size=4):
    """Deterministic init mimicking nn.Linear's U(-1/sqrt(fan_in), 1/sqrt(fan_in)).
    Weights stored as (in, out) for the x @ W convention used in the kernel."""
    ks = jax.random.split(key, 6)

    def lin(kw, kb, fan_in, fan_out):
        bound = 1.0 / jnp.sqrt(jnp.float32(fan_in))
        w = jax.random.uniform(kw, (fan_in, fan_out), jnp.float32, -bound, bound)
        b = jax.random.uniform(kb, (1, fan_out), jnp.float32, -bound, bound)
        return w, b

    w1, b1 = lin(ks[0], ks[1], input_size, hidden1)
    w2, b2 = lin(ks[2], ks[3], hidden1, hidden2)
    w3, b3 = lin(ks[4], ks[5], hidden2, output_size)
    return w1, b1, w2, b2, w3, b3


if __name__ == "__main__":
    key = jax.random.PRNGKey(0)
    k_params, k_x = jax.random.split(key)

    # Fused batch of environments/timesteps: 2 tiles of 128 rows each
    # (>=128 MXU rows per tile, exercises the parallel batch grid axis).
    batch = 256
    input_size, hidden1, hidden2, output_size = 64, 64, 32, 4

    params = init_params(k_params, input_size, hidden1, hidden2, output_size)
    x = jax.random.uniform(k_x, (batch, input_size), jnp.float32)  # maze state in [0,1)

    probs = network_forward(x, *params)
    probs = jax.block_until_ready(probs)

    # Reference with the same bf16-operand / f32-accumulate math as the kernel.
    w1, b1, w2, b2, w3, b3 = params

    def bdot(a, w):
        return jnp.dot(a.astype(jnp.bfloat16), w.astype(jnp.bfloat16),
                       preferred_element_type=jnp.float32)

    h1r = jnp.maximum(bdot(x, w1) + b1, 0.0)
    h2r = jnp.maximum(bdot(h1r, w2) + b2, 0.0)
    ref = jax.nn.softmax(bdot(h2r, w3) + b3, axis=1)

    # Pure f32 reference (original module semantics) as a looser sanity check.
    h1f = jnp.maximum(x @ w1 + b1, 0.0)
    h2f = jnp.maximum(h1f @ w2 + b2, 0.0)
    ref_f32 = jax.nn.softmax(h2f @ w3 + b3, axis=1)

    assert probs.shape == (batch, output_size)
    assert jnp.allclose(probs, ref, atol=2e-3, rtol=2e-3)
    assert jnp.allclose(probs, ref_f32, atol=3e-2, rtol=3e-2)
    # Exact divide in the kernel -> rows sum to 1 to float precision.
    assert jnp.allclose(jnp.sum(probs, axis=1), 1.0, atol=1e-5)

    print("KERNEL_OK")
</pallas_src>

<mosaic_0001>
module attributes {stable_mosaic.version = 11 : i64} {
  func.func @mlp_softmax_kernel(%arg0: i32, %arg1: memref<128x64xbf16, #tpu.memory_space<vmem>>, %arg2: memref<64x64xbf16, #tpu.memory_space<vmem>>, %arg3: memref<1x64xf32, #tpu.memory_space<vmem>>, %arg4: memref<64x32xbf16, #tpu.memory_space<vmem>>, %arg5: memref<1x32xf32, #tpu.memory_space<vmem>>, %arg6: memref<32x4xbf16, #tpu.memory_space<vmem>>, %arg7: memref<1x4xf32, #tpu.memory_space<vmem>>, %arg8: memref<128x4xf32, #tpu.memory_space<vmem>>) attributes {dimension_semantics = [#tpu.dimension_semantics<parallel>], iteration_bounds = array<i64: 2>, scalar_prefetch = 0 : i64, scratch_operands = 0 : i64, tpu.core_type = #tpu.core_type<tc>, window_params = [{transform_indices = @transform_0, window_bounds = array<i64: 128, 64>}, {pipeline_mode = #tpu.pipeline_mode<synchronous>, transform_indices = @transform_1, window_bounds = array<i64: 64, 64>}, {pipeline_mode = #tpu.pipeline_mode<synchronous>, transform_indices = @transform_2, window_bounds = array<i64: 1, 64>}, {pipeline_mode = #tpu.pipeline_mode<synchronous>, transform_indices = @transform_3, window_bounds = array<i64: 64, 32>}, {pipeline_mode = #tpu.pipeline_mode<synchronous>, transform_indices = @transform_4, window_bounds = array<i64: 1, 32>}, {pipeline_mode = #tpu.pipeline_mode<synchronous>, transform_indices = @transform_5, window_bounds = array<i64: 32, 4>}, {pipeline_mode = #tpu.pipeline_mode<synchronous>, transform_indices = @transform_6, window_bounds = array<i64: 1, 4>}, {transform_indices = @transform_7, window_bounds = array<i64: 128, 4>}]} {
    %c0 = arith.constant 0 : index
    %c0_0 = arith.constant 0 : index
    %0 = vector.load %arg1[%c0, %c0_0] : memref<128x64xbf16, #tpu.memory_space<vmem>>, vector<128x64xbf16>
    %c0_1 = arith.constant 0 : index
    %c0_2 = arith.constant 0 : index
    %1 = vector.load %arg2[%c0_1, %c0_2] : memref<64x64xbf16, #tpu.memory_space<vmem>>, vector<64x64xbf16>
    %cst = arith.constant dense<0.000000e+00> : vector<128x64xf32>
    %2 = tpu.matmul %0, %1, %cst {dimension_numbers = #tpu.dot_dimension_numbers<[1], [0], [0], [1], [0, 0, 1, 1], [], []>} : vector<128x64xbf16>, vector<64x64xbf16>, vector<128x64xf32> -> vector<128x64xf32>
    %c0_3 = arith.constant 0 : index
    %c0_4 = arith.constant 0 : index
    %3 = vector.load %arg3[%c0_3, %c0_4] : memref<1x64xf32, #tpu.memory_space<vmem>>, vector<1x64xf32>
    %4 = vector.broadcast %3 : vector<1x64xf32> to vector<128x64xf32>
    %5 = arith.addf %2, %4 : vector<128x64xf32>
    %cst_5 = arith.constant 0.000000e+00 : f32
    %6 = vector.broadcast %cst_5 : f32 to vector<128x64xf32>
    %7 = arith.maximumf %5, %6 : vector<128x64xf32>
    %8 = arith.truncf %7 : vector<128x64xf32> to vector<128x64xbf16>
    %c0_6 = arith.constant 0 : index
    %c0_7 = arith.constant 0 : index
    %9 = vector.load %arg4[%c0_6, %c0_7] : memref<64x32xbf16, #tpu.memory_space<vmem>>, vector<64x32xbf16>
    %cst_8 = arith.constant dense<0.000000e+00> : vector<128x32xf32>
    %10 = tpu.matmul %8, %9, %cst_8 {dimension_numbers = #tpu.dot_dimension_numbers<[1], [0], [0], [1], [0, 0, 1, 1], [], []>} : vector<128x64xbf16>, vector<64x32xbf16>, vector<128x32xf32> -> vector<128x32xf32>
    %c0_9 = arith.constant 0 : index
    %c0_10 = arith.constant 0 : index
    %11 = vector.load %arg5[%c0_9, %c0_10] : memref<1x32xf32, #tpu.memory_space<vmem>>, vector<1x32xf32>
    %12 = vector.broadcast %11 : vector<1x32xf32> to vector<128x32xf32>
    %13 = arith.addf %10, %12 : vector<128x32xf32>
    %cst_11 = arith.constant 0.000000e+00 : f32
    %14 = vector.broadcast %cst_11 : f32 to vector<128x32xf32>
    %15 = arith.maximumf %13, %14 : vector<128x32xf32>
    %16 = arith.truncf %15 : vector<128x32xf32> to vector<128x32xbf16>
    %c0_12 = arith.constant 0 : index
    %c0_13 = arith.constant 0 : index
    %17 = vector.load %arg6[%c0_12, %c0_13] : memref<32x4xbf16, #tpu.memory_space<vmem>>, vector<32x4xbf16>
    %cst_14 = arith.constant dense<0.000000e+00> : vector<128x4xf32>
    %18 = tpu.matmul %16, %17, %cst_14 {dimension_numbers = #tpu.dot_dimension_numbers<[1], [0], [0], [1], [0, 0, 1, 1], [], []>} : vector<128x32xbf16>, vector<32x4xbf16>, vector<128x4xf32> -> vector<128x4xf32>
    %c0_15 = arith.constant 0 : index
    %c0_16 = arith.constant 0 : index
    %19 = vector.load %arg7[%c0_15, %c0_16] : memref<1x4xf32, #tpu.memory_space<vmem>>, vector<1x4xf32>
    %20 = vector.broadcast %19 : vector<1x4xf32> to vector<128x4xf32>
    %21 = arith.addf %18, %20 : vector<128x4xf32>
    %cst_17 = arith.constant dense<0xFF800000> : vector<128xf32>
    %22 = vector.multi_reduction <maximumf>, %21, %cst_17 [1] : vector<128x4xf32> to vector<128xf32>
    %23 = vector.shape_cast %22 : vector<128xf32> to vector<128x1xf32>
    %24 = vector.broadcast %23 : vector<128x1xf32> to vector<128x4xf32>
    %25 = arith.subf %21, %24 : vector<128x4xf32>
    %26 = math.exp %25 : vector<128x4xf32>
    %cst_18 = arith.constant dense<0.000000e+00> : vector<128xf32>
    %27 = vector.multi_reduction <add>, %26, %cst_18 [1] : vector<128x4xf32> to vector<128xf32>
    %28 = vector.shape_cast %27 : vector<128xf32> to vector<128x1xf32>
    %29 = vector.broadcast %28 : vector<128x1xf32> to vector<128x4xf32>
    %30 = arith.divf %26, %29 : vector<128x4xf32>
    %c0_19 = arith.constant 0 : index
    %c0_20 = arith.constant 0 : index
    %31 = vector.load %arg8[%c0_19, %c0_20] : memref<128x4xf32, #tpu.memory_space<vmem>>, vector<128x4xf32>
    tpu.vector_store %arg8[%c0_19, %c0_20], %30 {strides = array<i32>} : memref<128x4xf32, #tpu.memory_space<vmem>>, vector<128x4xf32>,
    return
  }
  func.func @transform_0(%arg0: i32) -> (i32, i32) {
    %c0_i32 = arith.constant 0 : i32
    %c0_i32_0 = arith.constant 0 : i32
    return %arg0, %c0_i32 : i32, i32
  }
  func.func @transform_1(%arg0: i32) -> (i32, i32) {
    %c0_i32 = arith.constant 0 : i32
    %c0_i32_0 = arith.constant 0 : i32
    %c0_i32_1 = arith.constant 0 : i32
    return %c0_i32, %c0_i32_0 : i32, i32
  }
  func.func @transform_2(%arg0: i32) -> (i32, i32) {
    %c0_i32 = arith.constant 0 : i32
    %c0_i32_0 = arith.constant 0 : i32
    %c0_i32_1 = arith.constant 0 : i32
    return %c0_i32, %c0_i32_0 : i32, i32
  }
  func.func @transform_3(%arg0: i32) -> (i32, i32) {
    %c0_i32 = arith.constant 0 : i32
    %c0_i32_0 = arith.constant 0 : i32
    %c0_i32_1 = arith.constant 0 : i32
    return %c0_i32, %c0_i32_0 : i32, i32
  }
  func.func @transform_4(%arg0: i32) -> (i32, i32) {
    %c0_i32 = arith.constant 0 : i32
    %c0_i32_0 = arith.constant 0 : i32
    %c0_i32_1 = arith.constant 0 : i32
    return %c0_i32, %c0_i32_0 : i32, i32
  }
  func.func @transform_5(%arg0: i32) -> (i32, i32) {
    %c0_i32 = arith.constant 0 : i32
    %c0_i32_0 = arith.constant 0 : i32
    %c0_i32_1 = arith.constant 0 : i32
    return %c0_i32, %c0_i32_0 : i32, i32
  }
  func.func @transform_6(%arg0: i32) -> (i32, i32) {
    %c0_i32 = arith.constant 0 : i32
    %c0_i32_0 = arith.constant 0 : i32
    %c0_i32_1 = arith.constant 0 : i32
    return %c0_i32, %c0_i32_0 : i32, i32
  }
  func.func @transform_7(%arg0: i32) -> (i32, i32) {
    %c0_i32 = arith.constant 0 : i32
    %c0_i32_0 = arith.constant 0 : i32
    return %arg0, %c0_i32 : i32, i32
  }
}

</mosaic_0001>

<llo_original>
// kernel: tpu_custom_call.1
$region0: #{tpu_custom_call.1}
  #allocation0 [shape = 'u32[]', space=smem, size = 0x4, offset = 0x4, fixed_abs, tag = 'smem constant byte address 0x4 - core index']
  #allocation1 [shape = 'u32[72,128]{1,0:T(1,128)}', space=vmem, size = 0x9000, scoped, tag = 'internal scratch']
  %s0 = inlined_call_operand.vmem [shape: bf16[256,64], index: 0, kind: input, shape index: {}]
  %s1 = inlined_call_operand.vmem [shape: bf16[64,64], index: 1, kind: input, shape index: {}]
  %s2 = inlined_call_operand.vmem [shape: f32[1,64], index: 2, kind: input, shape index: {}]
  %s3 = inlined_call_operand.vmem [shape: bf16[64,32], index: 3, kind: input, shape index: {}]
  %s4 = inlined_call_operand.vmem [shape: f32[1,32], index: 4, kind: input, shape index: {}]
  %s5 = inlined_call_operand.vmem [shape: bf16[32,4], index: 5, kind: input, shape index: {}]
  %s6 = inlined_call_operand.vmem [shape: f32[1,4], index: 6, kind: input, shape index: {}]
  %s7 = inlined_call_operand.vmem [shape: f32[256,4], index: 7, kind: output, shape index: {}]
  %s8 = sld [smem:[#allocation0]]
  $region61: #{tpu_custom_call.1} parent=0
    _
  %s10 = ssub.s32 1, %s8
  %s11 = scalar_select 0, %s10, %s8
  loop: start=0, step=1, limit=4
  $region2: #{tpu_custom_call.1} parent=0 // loop_pre_header
    _
  $region3: #{tpu_custom_call.1} parent=0 // loop_header
    %s13 = sphi 0, %s17
    %p14 = scmp.ge.s32.totalorder %s13, 4
    %s23 = sphi 0, %s25
    %s26 = sphi 0, %s23
    %s27 = sphi 0, %s26
    %s43 = sphi 0, %s27
    %s47 = sphi 0, %s47
    %s49 = sphi 0, %s47
    %s50 = sphi 0, %s49
    %s64 = sphi 0, %s50
    %s68 = sphi 0, %s68
    %s70 = sphi 0, %s68
    %s71 = sphi 0, %s70
    %s85 = sphi 0, %s71
    %s89 = sphi 0, %s89
    %s91 = sphi 0, %s89
    %s92 = sphi 0, %s91
    %s106 = sphi 0, %s92
    %s110 = sphi 0, %s110
    %s112 = sphi 0, %s110
    %s113 = sphi 0, %s112
    %s127 = sphi 0, %s113
    %s131 = sphi 0, %s131
    %s133 = sphi 0, %s131
    %s134 = sphi 0, %s133
    %s148 = sphi 0, %s134
    %s152 = sphi 0, %s152
    %s154 = sphi 0, %s152
    %s155 = sphi 0, %s154
    %s169 = sphi 0, %s155
    %s175 = sphi 0, %s177
    %s178 = sphi 0, %s175
    %s179 = sphi 0, %s178
    %s195 = sphi 0, %s179
  $region4: #{tpu_custom_call.1} parent=0 // loop_header_branch
    %16 = sbr.rel (%p14) target = $region8
  $region5: #{tpu_custom_call.1} parent=0 // loop_body
    %s18 = ssub.s32 %s13, 1
    %s19 = ssub.s32 %s13, 2
    %s20 = sadd.s32 %s13, 1
    %s21 = ssub.s32 %s13, %s20
    %p22 = scmp.eq.s32.totalorder %s21, 0
    %s24 = sadd.s32 %s23, 1
    %s25 = scalar_select %p22, %s23, %s24
    %p28 = pneg %p22
    %p29 = scmp.eq.s32.totalorder %s13, 1
    %p30 = por %p28, %p29
    %p31 = scmp.ne.s32.totalorder %s23, %s26
    %p32 = scmp.eq.s32.totalorder %s13, 0
    %p33 = por %p31, %p32
    %p34 = scmp.ne.s32.totalorder %s23, %s26
    %p35 = scmp.eq.s32.totalorder %s18, 1
    %p36 = por %p34, %p35
    %p37 = scmp.ne.s32.totalorder %s26, %s27
    %p38 = scmp.eq.s32.totalorder %s18, 0
    %p39 = por %p37, %p38
    %p40 = scmp.ne.s32.totalorder %s26, %s27
    %p41 = scmp.eq.s32.totalorder %s19, 1
    %p42 = por %p40, %p41
    %p44 = scmp.ne.s32.totalorder %s27, %s43
    %p45 = scmp.eq.s32.totalorder %s19, 0
    %p46 = por %p44, %p45
    %s48 = sadd.s32 %s47, 1
    %p51 = scmp.eq.s32.totalorder %s13, 1
    %p52 = scmp.ne.s32.totalorder %s47, %s49
    %p53 = scmp.eq.s32.totalorder %s13, 0
    %p54 = por %p52, %p53
    %p55 = scmp.ne.s32.totalorder %s47, %s49
    %p56 = scmp.eq.s32.totalorder %s18, 1
    %p57 = por %p55, %p56
    %p58 = scmp.ne.s32.totalorder %s49, %s50
    %p59 = scmp.eq.s32.totalorder %s18, 0
    %p60 = por %p58, %p59
    %p61 = scmp.ne.s32.totalorder %s49, %s50
    %p62 = scmp.eq.s32.totalorder %s19, 1
    %p63 = por %p61, %p62
    %p65 = scmp.ne.s32.totalorder %s50, %s64
    %p66 = scmp.eq.s32.totalorder %s19, 0
    %p67 = por %p65, %p66
    %s69 = sadd.s32 %s68, 1
    %p72 = scmp.eq.s32.totalorder %s13, 1
    %p73 = scmp.ne.s32.totalorder %s68, %s70
    %p74 = scmp.eq.s32.totalorder %s13, 0
    %p75 = por %p73, %p74
    %p76 = scmp.ne.s32.totalorder %s68, %s70
    %p77 = scmp.eq.s32.totalorder %s18, 1
    %p78 = por %p76, %p77
    %p79 = scmp.ne.s32.totalorder %s70, %s71
    %p80 = scmp.eq.s32.totalorder %s18, 0
    %p81 = por %p79, %p80
    %p82 = scmp.ne.s32.totalorder %s70, %s71
    %p83 = scmp.eq.s32.totalorder %s19, 1
    %p84 = por %p82, %p83
    %p86 = scmp.ne.s32.totalorder %s71, %s85
    %p87 = scmp.eq.s32.totalorder %s19, 0
    %p88 = por %p86, %p87
    %s90 = sadd.s32 %s89, 1
    %p93 = scmp.eq.s32.totalorder %s13, 1
    %p94 = scmp.ne.s32.totalorder %s89, %s91
    %p95 = scmp.eq.s32.totalorder %s13, 0
    %p96 = por %p94, %p95
    %p97 = scmp.ne.s32.totalorder %s89, %s91
    %p98 = scmp.eq.s32.totalorder %s18, 1
    %p99 = por %p97, %p98
    %p100 = scmp.ne.s32.totalorder %s91, %s92
    %p101 = scmp.eq.s32.totalorder %s18, 0
    %p102 = por %p100, %p101
    %p103 = scmp.ne.s32.totalorder %s91, %s92
    %p104 = scmp.eq.s32.totalorder %s19, 1
    %p105 = por %p103, %p104
    %p107 = scmp.ne.s32.totalorder %s92, %s106
    %p108 = scmp.eq.s32.totalorder %s19, 0
    %p109 = por %p107, %p108
    %s111 = sadd.s32 %s110, 1
    %p114 = scmp.eq.s32.totalorder %s13, 1
    %p115 = scmp.ne.s32.totalorder %s110, %s112
    %p116 = scmp.eq.s32.totalorder %s13, 0
    %p117 = por %p115, %p116
    %p118 = scmp.ne.s32.totalorder %s110, %s112
    %p119 = scmp.eq.s32.totalorder %s18, 1
    %p120 = por %p118, %p119
    %p121 = scmp.ne.s32.totalorder %s112, %s113
    %p122 = scmp.eq.s32.totalorder %s18, 0
    %p123 = por %p121, %p122
    %p124 = scmp.ne.s32.totalorder %s112, %s113
    %p125 = scmp.eq.s32.totalorder %s19, 1
    %p126 = por %p124, %p125
    %p128 = scmp.ne.s32.totalorder %s113, %s127
    %p129 = scmp.eq.s32.totalorder %s19, 0
    %p130 = por %p128, %p129
    %s132 = sadd.s32 %s131, 1
    %p135 = scmp.eq.s32.totalorder %s13, 1
    %p136 = scmp.ne.s32.totalorder %s131, %s133
    %p137 = scmp.eq.s32.totalorder %s13, 0
    %p138 = por %p136, %p137
    %p139 = scmp.ne.s32.totalorder %s131, %s133
    %p140 = scmp.eq.s32.totalorder %s18, 1
    %p141 = por %p139, %p140
    %p142 = scmp.ne.s32.totalorder %s133, %s134
    %p143 = scmp.eq.s32.totalorder %s18, 0
    %p144 = por %p142, %p143
    %p145 = scmp.ne.s32.totalorder %s133, %s134
    %p146 = scmp.eq.s32.totalorder %s19, 1
    %p147 = por %p145, %p146
    %p149 = scmp.ne.s32.totalorder %s134, %s148
    %p150 = scmp.eq.s32.totalorder %s19, 0
    %p151 = por %p149, %p150
    %s153 = sadd.s32 %s152, 1
    %p156 = scmp.eq.s32.totalorder %s13, 1
    %p157 = scmp.ne.s32.totalorder %s152, %s154
    %p158 = scmp.eq.s32.totalorder %s13, 0
    %p159 = por %p157, %p158
    %p160 = scmp.ne.s32.totalorder %s152, %s154
    %p161 = scmp.eq.s32.totalorder %s18, 1
    %p162 = por %p160, %p161
    %p163 = scmp.ne.s32.totalorder %s154, %s155
    %p164 = scmp.eq.s32.totalorder %s18, 0
    %p165 = por %p163, %p164
    %p166 = scmp.ne.s32.totalorder %s154, %s155
    %p167 = scmp.eq.s32.totalorder %s19, 1
    %p168 = por %p166, %p167
    %p170 = scmp.ne.s32.totalorder %s155, %s169
    %p171 = scmp.eq.s32.totalorder %s19, 0
    %p172 = por %p170, %p171
    %s173 = ssub.s32 %s13, %s20
    %p174 = scmp.eq.s32.totalorder %s173, 0
    %s176 = sadd.s32 %s175, 1
    %s177 = scalar_select %p174, %s175, %s176
    %p180 = pneg %p174
    %p181 = scmp.eq.s32.totalorder %s13, 1
    %p182 = por %p180, %p181
    %p183 = scmp.ne.s32.totalorder %s175, %s178
    %p184 = scmp.eq.s32.totalorder %s13, 0
    %p185 = por %p183, %p184
    %p186 = scmp.ne.s32.totalorder %s175, %s178
    %p187 = scmp.eq.s32.totalorder %s18, 1
    %p188 = por %p186, %p187
    %p189 = scmp.ne.s32.totalorder %s178, %s179
    %p190 = scmp.eq.s32.totalorder %s18, 0
    %p191 = por %p189, %p190
    %p192 = scmp.ne.s32.totalorder %s178, %s179
    %p193 = scmp.eq.s32.totalorder %s19, 1
    %p194 = por %p192, %p193
    %p196 = scmp.ne.s32.totalorder %s179, %s195
    %p197 = scmp.eq.s32.totalorder %s19, 0
    %p198 = por %p196, %p197
    %p199 = scmp.le.s32.totalorder 1, %s13
    %p200 = scmp.lt.s32.totalorder %s13, 3
    %p201 = pnand %p199, %p200
    %p202 = pneg %p201
    // Predicated region
    $region9: #{tpu_custom_call.1} parent=5 // pred_check
      _
    $region10: #{tpu_custom_call.1} parent=5 // pred_check_branch
      %204 = sbr.rel (%p201) target = $region12
    $region11: #{tpu_custom_call.1} parent=5 // pred_region
      %s205 = ssub.s32 %s13, 1
      // Predicated region
      $region13: #{tpu_custom_call.1} parent=11 // pred_check
        %p206 = pneg %p60
      $region14: #{tpu_custom_call.1} parent=11 // pred_check_branch
        %208 = sbr.rel (%p206) target = $region16
      $region15: #{tpu_custom_call.1} parent=11 // pred_region
        _
      $region16: #{tpu_custom_call.1} parent=11 // pred_fallthru
        _
      // Predicated region
      $region17: #{tpu_custom_call.1} parent=11 // pred_check
        %p209 = pneg %p81
      $region18: #{tpu_custom_call.1} parent=11 // pred_check_branch
        %211 = sbr.rel (%p209) target = $region20
      $region19: #{tpu_custom_call.1} parent=11 // pred_region
        _
      $region20: #{tpu_custom_call.1} parent=11 // pred_fallthru
        _
      // Predicated region
      $region21: #{tpu_custom_call.1} parent=11 // pred_check
        %p212 = pneg %p102
      $region22: #{tpu_custom_call.1} parent=11 // pred_check_branch
        %214 = sbr.rel (%p212) target = $region24
      $region23: #{tpu_custom_call.1} parent=11 // pred_region
        _
      $region24: #{tpu_custom_call.1} parent=11 // pred_fallthru
        _
      // Predicated region
      $region25: #{tpu_custom_call.1} parent=11 // pred_check
        %p215 = pneg %p123
      $region26: #{tpu_custom_call.1} parent=11 // pred_check_branch
        %217 = sbr.rel (%p215) target = $region28
      $region27: #{tpu_custom_call.1} parent=11 // pred_region
        _
      $region28: #{tpu_custom_call.1} parent=11 // pred_fallthru
        _
      // Predicated region
      $region29: #{tpu_custom_call.1} parent=11 // pred_check
        %p218 = pneg %p144
      $region30: #{tpu_custom_call.1} parent=11 // pred_check_branch
        %220 = sbr.rel (%p218) target = $region32
      $region31: #{tpu_custom_call.1} parent=11 // pred_region
        _
      $region32: #{tpu_custom_call.1} parent=11 // pred_fallthru
        _
      // Predicated region
      $region33: #{tpu_custom_call.1} parent=11 // pred_check
        %p221 = pneg %p165
      $region34: #{tpu_custom_call.1} parent=11 // pred_check_branch
        %223 = sbr.rel (%p221) target = $region36
      $region35: #{tpu_custom_call.1} parent=11 // pred_region
        _
      $region36: #{tpu_custom_call.1} parent=11 // pred_fallthru
        _
    $region12: #{tpu_custom_call.1} parent=5 // pred_fallthru
      _
    %p224 = scmp.lt.s32.totalorder %s13, 2
    // Predicated region
    $region37: #{tpu_custom_call.1} parent=5 // pred_check
      %p225 = pneg %p224
    $region38: #{tpu_custom_call.1} parent=5 // pred_check_branch
      %227 = sbr.rel (%p225) target = $region40
    $region39: #{tpu_custom_call.1} parent=5 // pred_region
      // Predicated region
      $region41: #{tpu_custom_call.1} parent=39 // pred_check
        %p228 = pneg %p33
      $region42: #{tpu_custom_call.1} parent=39 // pred_check_branch
        %230 = sbr.rel (%p228) target = $region44
      $region43: #{tpu_custom_call.1} parent=39 // pred_region
        %s231 = smul.u32 16, %s13
        %p232 = scmp.lt.s32.totalorder %s231, 31
        %s233 = scalar_select %p232, %s231, 31
        %s234 = smul.addr %s233, 4
        %s235 = scalar_lea.vmem %s0, %s234
        %s236 = smul.u32 16, %s13
      $region44: #{tpu_custom_call.1} parent=39 // pred_fallthru
        _
    $region40: #{tpu_custom_call.1} parent=5 // pred_fallthru
      _
    %p237 = scmp.le.s32.totalorder 1, %s13
    %p238 = scmp.lt.s32.totalorder %s13, 3
    %p239 = pnand %p237, %p238
    %p240 = pneg %p239
    // Predicated region
    $region45: #{tpu_custom_call.1} parent=5 // pred_check
      _
    $region46: #{tpu_custom_call.1} parent=5 // pred_check_branch
      %242 = sbr.rel (%p239) target = $region48
    $region47: #{tpu_custom_call.1} parent=5 // pred_region
      %s243 = ssub.s32 %s13, 1
      %s244 = smul.u32 16, %s18
      %p245 = scmp.lt.s32.totalorder %s244, 31
      %s246 = scalar_select %p245, %s244, 31
      %s247 = smul.addr %s246, 4
      %s248 = scalar_lea.vmem %s0, %s247
      %p249 = pneg %p39
      %p250 = pneg %p36
      %p251 = pneg %p60
      %p252 = pneg %p57
      %p253 = pneg %p81
      %p254 = pneg %p78
      %p255 = pneg %p102
      %p256 = pneg %p99
      %p257 = pneg %p123
      %p258 = pneg %p120
      %p259 = pneg %p144
      %p260 = pneg %p141
      %p261 = pneg %p165
      %p262 = pneg %p162
      %p263 = pneg %p191
      %p264 = pneg %p188
      %s265 = smul.u32 16, %s18
      %p266 = scmp.lt.s32.totalorder %s265, 31
      %s267 = scalar_select %p266, %s265, 31
      %s268 = smul.addr %s267, 8
      %s269 = scalar_lea.vmem %s7, %s268
      %s270 = smul.u32 16, %s18
      %p271 = scmp.lt.s32.totalorder %s270, 31
      %s272 = scalar_select %p271, %s270, 31
      %s273 = smul.addr %s272, 4
      %s274 = scalar_lea.vmem %s0, %s273
      %s275 = smul.u32 16, %s18
      %s276 = smul.u32 16, %s18
      %p277 = scmp.lt.s32.totalorder %s276, 31
      %s278 = scalar_select %p277, %s276, 31
      %s279 = smul.addr %s278, 8
      %s280 = scalar_lea.vmem %s7, %s279
      %s281 = smul.u32 16, %s18
      %v283 = vld [vmem:[%s274] sm:$0xf]
      %v284 = vld [vmem:[%s274 + $0x4] sm:$0xf]
      %v285 = vld [vmem:[%s274 + $0x8] sm:$0xf]
      %v286 = vld [vmem:[%s274 + $0xc] sm:$0xf]
      %v287 = vld [vmem:[%s274 + $0x10] sm:$0xf]
      %v288 = vld [vmem:[%s274 + $0x14] sm:$0xf]
      %v289 = vld [vmem:[%s274 + $0x18] sm:$0xf]
      %v290 = vld [vmem:[%s274 + $0x1c] sm:$0xf]
      %v291 = vld [vmem:[%s274 + $0x20] sm:$0xf]
      %v292 = vld [vmem:[%s274 + $0x24] sm:$0xf]
      %v293 = vld [vmem:[%s274 + $0x28] sm:$0xf]
      %v294 = vld [vmem:[%s274 + $0x2c] sm:$0xf]
      %v295 = vld [vmem:[%s274 + $0x30] sm:$0xf]
      %v296 = vld [vmem:[%s274 + $0x34] sm:$0xf]
      %v297 = vld [vmem:[%s274 + $0x38] sm:$0xf]
      %v298 = vld [vmem:[%s274 + $0x3c] sm:$0xf]
      %v299 = vld [vmem:[%s1] sm:$0xf]
      %v300 = vld [vmem:[%s1 + $0x4] sm:$0xf]
      %v301 = vld [vmem:[%s1 + $0x8] sm:$0xf]
      %v302 = vld [vmem:[%s1 + $0xc] sm:$0xf]
      %v303 = vld [vmem:[%s1 + $0x10] sm:$0xf]
      %v304 = vld [vmem:[%s1 + $0x14] sm:$0xf]
      %v305 = vld [vmem:[%s1 + $0x18] sm:$0xf]
      %v306 = vld [vmem:[%s1 + $0x1c] sm:$0xf]
      %v307 = vld [vmem:[%s2] sm:$0x1]
      %v309 = vperm.slane %v307, 0
      %v327 = vunpack.c.l.b16 %v283
      %v328 = vunpack.c.l.b16 %v284
      %v329 = vunpack.c.l.b16 %v285
      %v330 = vunpack.c.l.b16 %v286
      %v331 = vunpack.c.l.b16 %v287
      %v332 = vunpack.c.l.b16 %v288
      %v333 = vunpack.c.l.b16 %v289
      %v334 = vunpack.c.l.b16 %v290
      %v335 = vunpack.c.l.b16 %v291
      %v336 = vunpack.c.l.b16 %v292
      %v337 = vunpack.c.l.b16 %v293
      %v338 = vunpack.c.l.b16 %v294
      %v339 = vunpack.c.l.b16 %v295
      %v340 = vunpack.c.l.b16 %v296
      %v341 = vunpack.c.l.b16 %v297
      %v342 = vunpack.c.l.b16 %v298
      %v343 = vpack.c.b16 %v328, %v327
      %v344 = vpack.c.b16 %v330, %v329
      %v345 = vpack.c.b16 %v332, %v331
      %v346 = vpack.c.b16 %v334, %v333
      %v347 = vpack.c.b16 %v336, %v335
      %v348 = vpack.c.b16 %v338, %v337
      %v349 = vpack.c.b16 %v340, %v339
      %v350 = vpack.c.b16 %v342, %v341
      %v359 = vunpack.c.l.b16 %v299
      %v360 = vunpack.c.l.b16 %v300
      %v361 = vunpack.c.l.b16 %v301
      %v362 = vunpack.c.l.b16 %v302
      %v363 = vunpack.c.l.b16 %v303
      %v364 = vunpack.c.l.b16 %v304
      %v365 = vunpack.c.l.b16 %v305
      %v366 = vunpack.c.l.b16 %v306
      %v367 = vpack.c.b16 %v360, %v359
      %v368 = vpack.c.b16 %v362, %v361
      %v369 = vpack.c.b16 %v364, %v363
      %v370 = vpack.c.b16 %v366, %v365
      %vm375 = vcmask 523264
      %v377 = vsel %vm375, %v343, 0
      %v380 = vsel %vm375, %v344, 0
      %v383 = vsel %vm375, %v345, 0
      %v386 = vsel %vm375, %v346, 0
      %v389 = vsel %vm375, %v347, 0
      %v392 = vsel %vm375, %v348, 0
      %v395 = vsel %vm375, %v349, 0
      %v398 = vsel %vm375, %v350, 0
      %400 = vmatpush.bf16.msra.mxu0 0
      %401 = vmatpush.bf16.msra.mxu0 0
      %402 = vmatpush.bf16.msra.mxu0 0
      %403 = vmatpush.bf16.msra.mxu0 0
      %404 = vmatpush.bf16.msra.mxu0 %v370
      %405 = vmatpush.bf16.msra.mxu0 %v369
      %406 = vmatpush.bf16.msra.mxu0 %v368
      %407 = vmatpush.bf16.msra.mxu0 %v367
      %408 = vmatmul.bf16.gmra.mxu0 %v377
      %v409 = vpop.f32.mrf.mxu0
      %v410 = vadd.f32 %v309, %v409
      %v411 = vpop.f32.mrf.mxu0
      %v412 = vadd.f32 %v309, %v411
      %413 = vmatmul.bf16.gmra.mxu0 %v380
      %v414 = vpop.f32.mrf.mxu0
      %v415 = vadd.f32 %v309, %v414
      %v416 = vpop.f32.mrf.mxu0
      %v417 = vadd.f32 %v309, %v416
      %418 = vmatmul.bf16.gmra.mxu0 %v383
      %v419 = vpop.f32.mrf.mxu0
      %v420 = vadd.f32 %v309, %v419
      %v421 = vpop.f32.mrf.mxu0
      %v422 = vadd.f32 %v309, %v421
      %423 = vmatmul.bf16.gmra.mxu0 %v386
      %v424 = vpop.f32.mrf.mxu0
      %v425 = vadd.f32 %v309, %v424
      %v426 = vpop.f32.mrf.mxu0
      %v427 = vadd.f32 %v309, %v426
      %428 = vmatmul.bf16.gmra.mxu0 %v389
      %v429 = vpop.f32.mrf.mxu0
      %v430 = vadd.f32 %v309, %v429
      %v431 = vpop.f32.mrf.mxu0
      %v432 = vadd.f32 %v309, %v431
      %433 = vmatmul.bf16.gmra.mxu0 %v392
      %v434 = vpop.f32.mrf.mxu0
      %v435 = vadd.f32 %v309, %v434
      %v436 = vpop.f32.mrf.mxu0
      %v437 = vadd.f32 %v309, %v436
      %438 = vmatmul.bf16.gmra.mxu0 %v395
      %v439 = vpop.f32.mrf.mxu0
      %v440 = vadd.f32 %v309, %v439
      %v441 = vpop.f32.mrf.mxu0
      %v442 = vadd.f32 %v309, %v441
      %443 = vmatmul.bf16.gmra.mxu0 %v398
      %v444 = vpop.f32.mrf.mxu0
      %v445 = vadd.f32 %v309, %v444
      %v446 = vpop.f32.mrf.mxu0
      %v447 = vadd.f32 %v309, %v446
      %448 = vdwg.mxu0
      %v449 = vmax.f32 %v410, 0.0
      %v450 = vmax.f32 %v412, 0.0
      %v451 = vmax.f32 %v415, 0.0
      %v452 = vmax.f32 %v417, 0.0
      %v453 = vmax.f32 %v420, 0.0
      %v454 = vmax.f32 %v422, 0.0
      %v455 = vmax.f32 %v425, 0.0
      %v456 = vmax.f32 %v427, 0.0
      %v457 = vmax.f32 %v430, 0.0
      %v458 = vmax.f32 %v432, 0.0
      %v459 = vmax.f32 %v435, 0.0
      %v460 = vmax.f32 %v437, 0.0
      %v461 = vmax.f32 %v440, 0.0
      %v462 = vmax.f32 %v442, 0.0
      %v463 = vmax.f32 %v445, 0.0
      %v464 = vmax.f32 %v447, 0.0
      %v465 = vpack.c.bf16 %v450, %v449
      %v466 = vpack.c.bf16 %v452, %v451
      %v467 = vpack.c.bf16 %v454, %v453
      %v468 = vpack.c.bf16 %v456, %v455
      %v469 = vpack.c.bf16 %v458, %v457
      %v470 = vpack.c.bf16 %v460, %v459
      %v471 = vpack.c.bf16 %v462, %v461
      %v472 = vpack.c.bf16 %v464, %v463
      %v473 = vld [vmem:[%s3] sm:$0xf]
      %v474 = vld [vmem:[%s3 + $0x4] sm:$0xf]
      %v475 = vld [vmem:[%s3 + $0x8] sm:$0xf]
      %v476 = vld [vmem:[%s3 + $0xc] sm:$0xf]
      %v477 = vld [vmem:[%s3 + $0x10] sm:$0xf]
      %v478 = vld [vmem:[%s3 + $0x14] sm:$0xf]
      %v479 = vld [vmem:[%s3 + $0x18] sm:$0xf]
      %v480 = vld [vmem:[%s3 + $0x1c] sm:$0xf]
      %v481 = vld [vmem:[%s4] sm:$0x1]
      %v483 = vperm.slane %v481, 0
      %v493 = vunpack.c.l.b16 %v473
      %v494 = vunpack.c.l.b16 %v474
      %v495 = vunpack.c.l.b16 %v475
      %v496 = vunpack.c.l.b16 %v476
      %v497 = vunpack.c.l.b16 %v477
      %v498 = vunpack.c.l.b16 %v478
      %v499 = vunpack.c.l.b16 %v479
      %v500 = vunpack.c.l.b16 %v480
      %v501 = vpack.c.b16 %v494, %v493
      %v502 = vpack.c.b16 %v496, %v495
      %v503 = vpack.c.b16 %v498, %v497
      %v504 = vpack.c.b16 %v500, %v499
      %v510 = vsel %vm375, %v465, 0
      %v513 = vsel %vm375, %v466, 0
      %v516 = vsel %vm375, %v467, 0
      %v519 = vsel %vm375, %v468, 0
      %v522 = vsel %vm375, %v469, 0
      %v525 = vsel %vm375, %v470, 0
      %v528 = vsel %vm375, %v471, 0
      %v531 = vsel %vm375, %v472, 0
      %533 = vmatpush.bf16.msra.mxu0 0
      %534 = vmatpush.bf16.msra.mxu0 0
      %535 = vmatpush.bf16.msra.mxu0 0
      %536 = vmatpush.bf16.msra.mxu0 0
      %537 = vmatpush.bf16.msra.mxu0 %v504
      %538 = vmatpush.bf16.msra.mxu0 %v503
      %539 = vmatpush.bf16.msra.mxu0 %v502
      %540 = vmatpush.bf16.msra.mxu0 %v501
      %541 = vmatmul.bf16.gmra.mxu0 %v510
      %v542 = vpop.f32.mrf.mxu0
      %v543 = vadd.f32 %v483, %v542
      %v544 = vpop.f32.mrf.mxu0
      %v545 = vadd.f32 %v483, %v544
      %546 = vmatmul.bf16.gmra.mxu0 %v513
      %v547 = vpop.f32.mrf.mxu0
      %v548 = vadd.f32 %v483, %v547
      %v549 = vpop.f32.mrf.mxu0
      %v550 = vadd.f32 %v483, %v549
      %551 = vmatmul.bf16.gmra.mxu0 %v516
      %v552 = vpop.f32.mrf.mxu0
      %v553 = vadd.f32 %v483, %v552
      %v554 = vpop.f32.mrf.mxu0
      %v555 = vadd.f32 %v483, %v554
      %556 = vmatmul.bf16.gmra.mxu0 %v519
      %v557 = vpop.f32.mrf.mxu0
      %v558 = vadd.f32 %v483, %v557
      %v559 = vpop.f32.mrf.mxu0
      %v560 = vadd.f32 %v483, %v559
      %561 = vmatmul.bf16.gmra.mxu0 %v522
      %v562 = vpop.f32.mrf.mxu0
      %v563 = vadd.f32 %v483, %v562
      %v564 = vpop.f32.mrf.mxu0
      %v565 = vadd.f32 %v483, %v564
      %566 = vmatmul.bf16.gmra.mxu0 %v525
      %v567 = vpop.f32.mrf.mxu0
      %v568 = vadd.f32 %v483, %v567
      %v569 = vpop.f32.mrf.mxu0
      %v570 = vadd.f32 %v483, %v569
      %571 = vmatmul.bf16.gmra.mxu0 %v528
      %v572 = vpop.f32.mrf.mxu0
      %v573 = vadd.f32 %v483, %v572
      %v574 = vpop.f32.mrf.mxu0
      %v575 = vadd.f32 %v483, %v574
      %576 = vmatmul.bf16.gmra.mxu0 %v531
      %v577 = vpop.f32.mrf.mxu0
      %v578 = vadd.f32 %v483, %v577
      %v579 = vpop.f32.mrf.mxu0
      %v580 = vadd.f32 %v483, %v579
      %581 = vdwg.mxu0
      %v582 = vmax.f32 %v543, 0.0
      %v583 = vmax.f32 %v545, 0.0
      %v584 = vmax.f32 %v548, 0.0
      %v585 = vmax.f32 %v550, 0.0
      %v586 = vmax.f32 %v553, 0.0
      %v587 = vmax.f32 %v555, 0.0
      %v588 = vmax.f32 %v558, 0.0
      %v589 = vmax.f32 %v560, 0.0
      %v590 = vmax.f32 %v563, 0.0
      %v591 = vmax.f32 %v565, 0.0
      %v592 = vmax.f32 %v568, 0.0
      %v593 = vmax.f32 %v570, 0.0
      %v594 = vmax.f32 %v573, 0.0
      %v595 = vmax.f32 %v575, 0.0
      %v596 = vmax.f32 %v578, 0.0
      %v597 = vmax.f32 %v580, 0.0
      %v598 = vpack.c.bf16 %v583, %v582
      %v599 = vpack.c.bf16 %v585, %v584
      %v600 = vpack.c.bf16 %v587, %v586
      %v601 = vpack.c.bf16 %v589, %v588
      %v602 = vpack.c.bf16 %v591, %v590
      %v603 = vpack.c.bf16 %v593, %v592
      %v604 = vpack.c.bf16 %v595, %v594
      %v605 = vpack.c.bf16 %v597, %v596
      %v606 = vld [vmem:[%s5] sm:$0xf]
      %v607 = vld [vmem:[%s5 + $0x4] sm:$0xf]
      %v608 = vld [vmem:[%s5 + $0x8] sm:$0xf]
      %v609 = vld [vmem:[%s5 + $0xc] sm:$0xf]
      %v610 = vld [vmem:[%s6] sm:$0x1]
      %v612 = vperm.slane %v610, 0
      %v618 = vunpack.c.l.b16 %v606
      %v619 = vunpack.c.l.b16 %v607
      %v620 = vunpack.c.l.b16 %v608
      %v621 = vunpack.c.l.b16 %v609
      %v622 = vpack.c.b16 %v619, %v618
      %v623 = vpack.c.b16 %v621, %v620
      %vm626 = vcmask 261120
      %v628 = vsel %vm626, %v598, 0
      %v631 = vsel %vm626, %v599, 0
      %v634 = vsel %vm626, %v600, 0
      %v637 = vsel %vm626, %v601, 0
      %v640 = vsel %vm626, %v602, 0
      %v643 = vsel %vm626, %v603, 0
      %v646 = vsel %vm626, %v604, 0
      %v649 = vsel %vm626, %v605, 0
      %651 = vmatpush.bf16.msra.mxu0 0
      %652 = vmatpush.bf16.msra.mxu0 0
      %653 = vmatpush.bf16.msra.mxu0 0
      %654 = vmatpush.bf16.msra.mxu0 0
      %655 = vmatpush.bf16.msra.mxu0 0
      %656 = vmatpush.bf16.msra.mxu0 0
      %657 = vmatpush.bf16.msra.mxu0 %v623
      %658 = vmatpush.bf16.msra.mxu0 %v622
      %659 = vmatmul.bf16.gmra.mxu0 %v628
      %v660 = vpop.f32.mrf.mxu0
      %v661 = vadd.f32 %v612, %v660
      %v662 = vpop.f32.mrf.mxu0
      %v663 = vadd.f32 %v612, %v662
      %664 = vmatmul.bf16.gmra.mxu0 %v631
      %v665 = vpop.f32.mrf.mxu0
      %v666 = vadd.f32 %v612, %v665
      %v667 = vpop.f32.mrf.mxu0
      %v668 = vadd.f32 %v612, %v667
      %669 = vmatmul.bf16.gmra.mxu0 %v634
      %v670 = vpop.f32.mrf.mxu0
      %v671 = vadd.f32 %v612, %v670
      %v672 = vpop.f32.mrf.mxu0
      %v673 = vadd.f32 %v612, %v672
      %674 = vmatmul.bf16.gmra.mxu0 %v637
      %v675 = vpop.f32.mrf.mxu0
      %v676 = vadd.f32 %v612, %v675
      %v677 = vpop.f32.mrf.mxu0
      %v678 = vadd.f32 %v612, %v677
      %679 = vmatmul.bf16.gmra.mxu0 %v640
      %v680 = vpop.f32.mrf.mxu0
      %v681 = vadd.f32 %v612, %v680
      %v682 = vpop.f32.mrf.mxu0
      %v683 = vadd.f32 %v612, %v682
      %684 = vmatmul.bf16.gmra.mxu0 %v643
      %v685 = vpop.f32.mrf.mxu0
      %v686 = vadd.f32 %v612, %v685
      %v687 = vpop.f32.mrf.mxu0
      %v688 = vadd.f32 %v612, %v687
      %689 = vmatmul.bf16.gmra.mxu0 %v646
      %v690 = vpop.f32.mrf.mxu0
      %v691 = vadd.f32 %v612, %v690
      %v692 = vpop.f32.mrf.mxu0
      %v693 = vadd.f32 %v612, %v692
      %694 = vmatmul.bf16.gmra.mxu0 %v649
      %v695 = vpop.f32.mrf.mxu0
      %v696 = vadd.f32 %v612, %v695
      %v697 = vpop.f32.mrf.mxu0
      %v698 = vadd.f32 %v612, %v697
      %699 = vdwg.mxu0
      %vm700 = vcmask 31744
      %v701 = vsel %vm700, %v661, -inf
      %702 = vmax.xlane.f32.xlu0 %v701
      %v703 = vpop.xlane.xlu0 %702
      %v704 = vsel %vm700, %v663, -inf
      %705 = vmax.xlane.f32.xlu0 %v704
      %v706 = vpop.xlane.xlu0 %705
      %v707 = vsel %vm700, %v666, -inf
      %708 = vmax.xlane.f32.xlu0 %v707
      %v709 = vpop.xlane.xlu0 %708
      %v710 = vsel %vm700, %v668, -inf
      %711 = vmax.xlane.f32.xlu0 %v710
      %v712 = vpop.xlane.xlu0 %711
      %v713 = vsel %vm700, %v671, -inf
      %714 = vmax.xlane.f32.xlu0 %v713
      %v715 = vpop.xlane.xlu0 %714
      %v716 = vsel %vm700, %v673, -inf
      %717 = vmax.xlane.f32.xlu0 %v716
      %v718 = vpop.xlane.xlu0 %717
      %v719 = vsel %vm700, %v676, -inf
      %720 = vmax.xlane.f32.xlu0 %v719
      %v721 = vpop.xlane.xlu0 %720
      %v722 = vsel %vm700, %v678, -inf
      %723 = vmax.xlane.f32.xlu0 %v722
      %v724 = vpop.xlane.xlu0 %723
      %v725 = vsel %vm700, %v681, -inf
      %726 = vmax.xlane.f32.xlu0 %v725
      %v727 = vpop.xlane.xlu0 %726
      %v728 = vsel %vm700, %v683, -inf
      %729 = vmax.xlane.f32.xlu0 %v728
      %v730 = vpop.xlane.xlu0 %729
      %v731 = vsel %vm700, %v686, -inf
      %732 = vmax.xlane.f32.xlu0 %v731
      %v733 = vpop.xlane.xlu0 %732
      %v734 = vsel %vm700, %v688, -inf
      %735 = vmax.xlane.f32.xlu0 %v734
      %v736 = vpop.xlane.xlu0 %735
      %v737 = vsel %vm700, %v691, -inf
      %738 = vmax.xlane.f32.xlu0 %v737
      %v739 = vpop.xlane.xlu0 %738
      %v740 = vsel %vm700, %v693, -inf
      %741 = vmax.xlane.f32.xlu0 %v740
      %v742 = vpop.xlane.xlu0 %741
      %v743 = vsel %vm700, %v696, -inf
      %744 = vmax.xlane.f32.xlu0 %v743
      %v745 = vpop.xlane.xlu0 %744
      %v746 = vsel %vm700, %v698, -inf
      %747 = vmax.xlane.f32.xlu0 %v746
      %v748 = vpop.xlane.xlu0 %747
      %v749 = vsub.f32 %v661, %v703
      %v750 = vsub.f32 %v663, %v706
      %v751 = vsub.f32 %v666, %v709
      %v752 = vsub.f32 %v668, %v712
      %v753 = vsub.f32 %v671, %v715
      %v754 = vsub.f32 %v673, %v718
      %v755 = vsub.f32 %v676, %v721
      %v756 = vsub.f32 %v678, %v724
      %v757 = vsub.f32 %v681, %v727
      %v758 = vsub.f32 %v683, %v730
      %v759 = vsub.f32 %v686, %v733
      %v760 = vsub.f32 %v688, %v736
      %v761 = vsub.f32 %v691, %v739
      %v762 = vsub.f32 %v693, %v742
      %v763 = vsub.f32 %v696, %v745
      %v764 = vsub.f32 %v698, %v748
      %v765 = vmul.f32 %v749, 1.442695
      %v766 = vpow.pop %v765
      %v767 = vmul.f32 %v750, 1.442695
      %v768 = vpow.pop %v767
      %v769 = vmul.f32 %v751, 1.442695
      %v770 = vpow.pop %v769
      %v771 = vmul.f32 %v752, 1.442695
      %v772 = vpow.pop %v771
      %v773 = vmul.f32 %v753, 1.442695
      %v774 = vpow.pop %v773
      %v775 = vmul.f32 %v754, 1.442695
      %v776 = vpow.pop %v775
      %v777 = vmul.f32 %v755, 1.442695
      %v778 = vpow.pop %v777
      %v779 = vmul.f32 %v756, 1.442695
      %v780 = vpow.pop %v779
      %v781 = vmul.f32 %v757, 1.442695
      %v782 = vpow.pop %v781
      %v783 = vmul.f32 %v758, 1.442695
      %v784 = vpow.pop %v783
      %v785 = vmul.f32 %v759, 1.442695
      %v786 = vpow.pop %v785
      %v787 = vmul.f32 %v760, 1.442695
      %v788 = vpow.pop %v787
      %v789 = vmul.f32 %v761, 1.442695
      %v790 = vpow.pop %v789
      %v791 = vmul.f32 %v762, 1.442695
      %v792 = vpow.pop %v791
      %v793 = vmul.f32 %v763, 1.442695
      %v794 = vpow.pop %v793
      %v795 = vmul.f32 %v764, 1.442695
      %v796 = vpow.pop %v795
      %v797 = vsel %vm700, %v766, 0.0
      %798 = vadd.xlane.f32.xlu0 %v797
      %v799 = vpop.xlane.xlu0 %798
      %v800 = vsel %vm700, %v768, 0.0
      %801 = vadd.xlane.f32.xlu0 %v800
      %v802 = vpop.xlane.xlu0 %801
      %v803 = vsel %vm700, %v770, 0.0
      %804 = vadd.xlane.f32.xlu0 %v803
      %v805 = vpop.xlane.xlu0 %804
      %v806 = vsel %vm700, %v772, 0.0
      %807 = vadd.xlane.f32.xlu0 %v806
      %v808 = vpop.xlane.xlu0 %807
      %v809 = vsel %vm700, %v774, 0.0
      %810 = vadd.xlane.f32.xlu0 %v809
      %v811 = vpop.xlane.xlu0 %810
      %v812 = vsel %vm700, %v776, 0.0
      %813 = vadd.xlane.f32.xlu0 %v812
      %v814 = vpop.xlane.xlu0 %813
      %v815 = vsel %vm700, %v778, 0.0
      %816 = vadd.xlane.f32.xlu0 %v815
      %v817 = vpop.xlane.xlu0 %816
      %v818 = vsel %vm700, %v780, 0.0
      %819 = vadd.xlane.f32.xlu0 %v818
      %v820 = vpop.xlane.xlu0 %819
      %v821 = vsel %vm700, %v782, 0.0
      %822 = vadd.xlane.f32.xlu0 %v821
      %v823 = vpop.xlane.xlu0 %822
      %v824 = vsel %vm700, %v784, 0.0
      %825 = vadd.xlane.f32.xlu0 %v824
      %v826 = vpop.xlane.xlu0 %825
      %v827 = vsel %vm700, %v786, 0.0
      %828 = vadd.xlane.f32.xlu0 %v827
      %v829 = vpop.xlane.xlu0 %828
      %v830 = vsel %vm700, %v788, 0.0
      %831 = vadd.xlane.f32.xlu0 %v830
      %v832 = vpop.xlane.xlu0 %831
      %v833 = vsel %vm700, %v790, 0.0
      %834 = vadd.xlane.f32.xlu0 %v833
      %v835 = vpop.xlane.xlu0 %834
      %v836 = vsel %vm700, %v792, 0.0
      %837 = vadd.xlane.f32.xlu0 %v836
      %v838 = vpop.xlane.xlu0 %837
      %v839 = vsel %vm700, %v794, 0.0
      %840 = vadd.xlane.f32.xlu0 %v839
      %v841 = vpop.xlane.xlu0 %840
      %v842 = vsel %vm700, %v796, 0.0
      %843 = vadd.xlane.f32.xlu0 %v842
      %v844 = vpop.xlane.xlu0 %843
      %v845 = vrcp.pop %v799
      %v846 = vmul.f32 %v799, %v845
      %v847 = vsub.f32 1.0, %v846
      %v848 = vmul.f32 %v845, %v847
      %v849 = vadd.f32 %v845, %v848
      %vm850 = vweird.f32 %v799
      %vm851 = vweird.f32 %v845
      %vm852 = vmor %vm850, %vm851
      %v853 = vsel %vm852, %v845, %v849
      %v854 = vand.u32 2147483647, %v799
      %vm855 = vcmp.eq.f32.partialorder %v854, 8.507059e+37
      %v856 = vand.u32 %v799, 2147483648
      %v857 = vor.u32 1.1754944e-38, %v856
      %v858 = vsel %vm855, %v857, %v853
      %v859 = vmul.f32 %v766, %v858
      %v860 = vrcp.pop %v802
      %v861 = vmul.f32 %v802, %v860
      %v862 = vsub.f32 1.0, %v861
      %v863 = vmul.f32 %v860, %v862
      %v864 = vadd.f32 %v860, %v863
      %vm865 = vweird.f32 %v802
      %vm866 = vweird.f32 %v860
      %vm867 = vmor %vm865, %vm866
      %v868 = vsel %vm867, %v860, %v864
      %v869 = vand.u32 2147483647, %v802
      %vm870 = vcmp.eq.f32.partialorder %v869, 8.507059e+37
      %v871 = vand.u32 %v802, 2147483648
      %v872 = vor.u32 1.1754944e-38, %v871
      %v873 = vsel %vm870, %v872, %v868
      %v874 = vmul.f32 %v768, %v873
      %v875 = vrcp.pop %v805
      %v876 = vmul.f32 %v805, %v875
      %v877 = vsub.f32 1.0, %v876
      %v878 = vmul.f32 %v875, %v877
      %v879 = vadd.f32 %v875, %v878
      %vm880 = vweird.f32 %v805
      %vm881 = vweird.f32 %v875
      %vm882 = vmor %vm880, %vm881
      %v883 = vsel %vm882, %v875, %v879
      %v884 = vand.u32 2147483647, %v805
      %vm885 = vcmp.eq.f32.partialorder %v884, 8.507059e+37
      %v886 = vand.u32 %v805, 2147483648
      %v887 = vor.u32 1.1754944e-38, %v886
      %v888 = vsel %vm885, %v887, %v883
      %v889 = vmul.f32 %v770, %v888
      %v890 = vrcp.pop %v808
      %v891 = vmul.f32 %v808, %v890
      %v892 = vsub.f32 1.0, %v891
      %v893 = vmul.f32 %v890, %v892
      %v894 = vadd.f32 %v890, %v893
      %vm895 = vweird.f32 %v808
      %vm896 = vweird.f32 %v890
      %vm897 = vmor %vm895, %vm896
      %v898 = vsel %vm897, %v890, %v894
      %v899 = vand.u32 2147483647, %v808
      %vm900 = vcmp.eq.f32.partialorder %v899, 8.507059e+37
      %v901 = vand.u32 %v808, 2147483648
      %v902 = vor.u32 1.1754944e-38, %v901
      %v903 = vsel %vm900, %v902, %v898
      %v904 = vmul.f32 %v772, %v903
      %v905 = vrcp.pop %v811
      %v906 = vmul.f32 %v811, %v905
      %v907 = vsub.f32 1.0, %v906
      %v908 = vmul.f32 %v905, %v907
      %v909 = vadd.f32 %v905, %v908
      %vm910 = vweird.f32 %v811
      %vm911 = vweird.f32 %v905
      %vm912 = vmor %vm910, %vm911
      %v913 = vsel %vm912, %v905, %v909
      %v914 = vand.u32 2147483647, %v811
      %vm915 = vcmp.eq.f32.partialorder %v914, 8.507059e+37
      %v916 = vand.u32 %v811, 2147483648
      %v917 = vor.u32 1.1754944e-38, %v916
      %v918 = vsel %vm915, %v917, %v913
      %v919 = vmul.f32 %v774, %v918
      %v920 = vrcp.pop %v814
      %v921 = vmul.f32 %v814, %v920
      %v922 = vsub.f32 1.0, %v921
      %v923 = vmul.f32 %v920, %v922
      %v924 = vadd.f32 %v920, %v923
      %vm925 = vweird.f32 %v814
      %vm926 = vweird.f32 %v920
      %vm927 = vmor %vm925, %vm926
      %v928 = vsel %vm927, %v920, %v924
      %v929 = vand.u32 2147483647, %v814
      %vm930 = vcmp.eq.f32.partialorder %v929, 8.507059e+37
      %v931 = vand.u32 %v814, 2147483648
      %v932 = vor.u32 1.1754944e-38, %v931
      %v933 = vsel %vm930, %v932, %v928
      %v934 = vmul.f32 %v776, %v933
      %v935 = vrcp.pop %v817
      %v936 = vmul.f32 %v817, %v935
      %v937 = vsub.f32 1.0, %v936
      %v938 = vmul.f32 %v935, %v937
      %v939 = vadd.f32 %v935, %v938
      %vm940 = vweird.f32 %v817
      %vm941 = vweird.f32 %v935
      %vm942 = vmor %vm940, %vm941
      %v943 = vsel %vm942, %v935, %v939
      %v944 = vand.u32 2147483647, %v817
      %vm945 = vcmp.eq.f32.partialorder %v944, 8.507059e+37
      %v946 = vand.u32 %v817, 2147483648
      %v947 = vor.u32 1.1754944e-38, %v946
      %v948 = vsel %vm945, %v947, %v943
      %v949 = vmul.f32 %v778, %v948
      %v950 = vrcp.pop %v820
      %v951 = vmul.f32 %v820, %v950
      %v952 = vsub.f32 1.0, %v951
      %v953 = vmul.f32 %v950, %v952
      %v954 = vadd.f32 %v950, %v953
      %vm955 = vweird.f32 %v820
      %vm956 = vweird.f32 %v950
      %vm957 = vmor %vm955, %vm956
      %v958 = vsel %vm957, %v950, %v954
      %v959 = vand.u32 2147483647, %v820
      %vm960 = vcmp.eq.f32.partialorder %v959, 8.507059e+37
      %v961 = vand.u32 %v820, 2147483648
      %v962 = vor.u32 1.1754944e-38, %v961
      %v963 = vsel %vm960, %v962, %v958
      %v964 = vmul.f32 %v780, %v963
      %v965 = vrcp.pop %v823
      %v966 = vmul.f32 %v823, %v965
      %v967 = vsub.f32 1.0, %v966
      %v968 = vmul.f32 %v965, %v967
      %v969 = vadd.f32 %v965, %v968
      %vm970 = vweird.f32 %v823
      %vm971 = vweird.f32 %v965
      %vm972 = vmor %vm970, %vm971
      %v973 = vsel %vm972, %v965, %v969
      %v974 = vand.u32 2147483647, %v823
      %vm975 = vcmp.eq.f32.partialorder %v974, 8.507059e+37
      %v976 = vand.u32 %v823, 2147483648
      %v977 = vor.u32 1.1754944e-38, %v976
      %v978 = vsel %vm975, %v977, %v973
      %v979 = vmul.f32 %v782, %v978
      %v980 = vrcp.pop %v826
      %v981 = vmul.f32 %v826, %v980
      %v982 = vsub.f32 1.0, %v981
      %v983 = vmul.f32 %v980, %v982
      %v984 = vadd.f32 %v980, %v983
      %vm985 = vweird.f32 %v826
      %vm986 = vweird.f32 %v980
      %vm987 = vmor %vm985, %vm986
      %v988 = vsel %vm987, %v980, %v984
      %v989 = vand.u32 2147483647, %v826
      %vm990 = vcmp.eq.f32.partialorder %v989, 8.507059e+37
      %v991 = vand.u32 %v826, 2147483648
      %v992 = vor.u32 1.1754944e-38, %v991
      %v993 = vsel %vm990, %v992, %v988
      %v994 = vmul.f32 %v784, %v993
      %v995 = vrcp.pop %v829
      %v996 = vmul.f32 %v829, %v995
      %v997 = vsub.f32 1.0, %v996
      %v998 = vmul.f32 %v995, %v997
      %v999 = vadd.f32 %v995, %v998
      %vm1000 = vweird.f32 %v829
      %vm1001 = vweird.f32 %v995
      %vm1002 = vmor %vm1000, %vm1001
      %v1003 = vsel %vm1002, %v995, %v999
      %v1004 = vand.u32 2147483647, %v829
      %vm1005 = vcmp.eq.f32.partialorder %v1004, 8.507059e+37
      %v1006 = vand.u32 %v829, 2147483648
      %v1007 = vor.u32 1.1754944e-38, %v1006
      %v1008 = vsel %vm1005, %v1007, %v1003
      %v1009 = vmul.f32 %v786, %v1008
      %v1010 = vrcp.pop %v832
      %v1011 = vmul.f32 %v832, %v1010
      %v1012 = vsub.f32 1.0, %v1011
      %v1013 = vmul.f32 %v1010, %v1012
      %v1014 = vadd.f32 %v1010, %v1013
      %vm1015 = vweird.f32 %v832
      %vm1016 = vweird.f32 %v1010
      %vm1017 = vmor %vm1015, %vm1016
      %v1018 = vsel %vm1017, %v1010, %v1014
      %v1019 = vand.u32 2147483647, %v832
      %vm1020 = vcmp.eq.f32.partialorder %v1019, 8.507059e+37
      %v1021 = vand.u32 %v832, 2147483648
      %v1022 = vor.u32 1.1754944e-38, %v1021
      %v1023 = vsel %vm1020, %v1022, %v1018
      %v1024 = vmul.f32 %v788, %v1023
      %v1025 = vrcp.pop %v835
      %v1026 = vmul.f32 %v835, %v1025
      %v1027 = vsub.f32 1.0, %v1026
      %v1028 = vmul.f32 %v1025, %v1027
      %v1029 = vadd.f32 %v1025, %v1028
      %vm1030 = vweird.f32 %v835
      %vm1031 = vweird.f32 %v1025
      %vm1032 = vmor %vm1030, %vm1031
      %v1033 = vsel %vm1032, %v1025, %v1029
      %v1034 = vand.u32 2147483647, %v835
      %vm1035 = vcmp.eq.f32.partialorder %v1034, 8.507059e+37
      %v1036 = vand.u32 %v835, 2147483648
      %v1037 = vor.u32 1.1754944e-38, %v1036
      %v1038 = vsel %vm1035, %v1037, %v1033
      %v1039 = vmul.f32 %v790, %v1038
      %v1040 = vrcp.pop %v838
      %v1041 = vmul.f32 %v838, %v1040
      %v1042 = vsub.f32 1.0, %v1041
      %v1043 = vmul.f32 %v1040, %v1042
      %v1044 = vadd.f32 %v1040, %v1043
      %vm1045 = vweird.f32 %v838
      %vm1046 = vweird.f32 %v1040
      %vm1047 = vmor %vm1045, %vm1046
      %v1048 = vsel %vm1047, %v1040, %v1044
      %v1049 = vand.u32 2147483647, %v838
      %vm1050 = vcmp.eq.f32.partialorder %v1049, 8.507059e+37
      %v1051 = vand.u32 %v838, 2147483648
      %v1052 = vor.u32 1.1754944e-38, %v1051
      %v1053 = vsel %vm1050, %v1052, %v1048
      %v1054 = vmul.f32 %v792, %v1053
      %v1055 = vrcp.pop %v841
      %v1056 = vmul.f32 %v841, %v1055
      %v1057 = vsub.f32 1.0, %v1056
      %v1058 = vmul.f32 %v1055, %v1057
      %v1059 = vadd.f32 %v1055, %v1058
      %vm1060 = vweird.f32 %v841
      %vm1061 = vweird.f32 %v1055
      %vm1062 = vmor %vm1060, %vm1061
      %v1063 = vsel %vm1062, %v1055, %v1059
      %v1064 = vand.u32 2147483647, %v841
      %vm1065 = vcmp.eq.f32.partialorder %v1064, 8.507059e+37
      %v1066 = vand.u32 %v841, 2147483648
      %v1067 = vor.u32 1.1754944e-38, %v1066
      %v1068 = vsel %vm1065, %v1067, %v1063
      %v1069 = vmul.f32 %v794, %v1068
      %v1070 = vrcp.pop %v844
      %v1071 = vmul.f32 %v844, %v1070
      %v1072 = vsub.f32 1.0, %v1071
      %v1073 = vmul.f32 %v1070, %v1072
      %v1074 = vadd.f32 %v1070, %v1073
      %vm1075 = vweird.f32 %v844
      %vm1076 = vweird.f32 %v1070
      %vm1077 = vmor %vm1075, %vm1076
      %v1078 = vsel %vm1077, %v1070, %v1074
      %v1079 = vand.u32 2147483647, %v844
      %vm1080 = vcmp.eq.f32.partialorder %v1079, 8.507059e+37
      %v1081 = vand.u32 %v844, 2147483648
      %v1082 = vor.u32 1.1754944e-38, %v1081
      %v1083 = vsel %vm1080, %v1082, %v1078
      %v1084 = vmul.f32 %v796, %v1083
      %1085 = vst.msk [vmem:[%s280] sm:$0xff] %vm700, %v859
      %1086 = vst.msk [vmem:[%s280 + $0x8] sm:$0xff] %vm700, %v874
      %1087 = vst.msk [vmem:[%s280 + $0x10] sm:$0xff] %vm700, %v889
      %1088 = vst.msk [vmem:[%s280 + $0x18] sm:$0xff] %vm700, %v904
      %1089 = vst.msk [vmem:[%s280 + $0x20] sm:$0xff] %vm700, %v919
      %1090 = vst.msk [vmem:[%s280 + $0x28] sm:$0xff] %vm700, %v934
      %1091 = vst.msk [vmem:[%s280 + $0x30] sm:$0xff] %vm700, %v949
      %1092 = vst.msk [vmem:[%s280 + $0x38] sm:$0xff] %vm700, %v964
      %1093 = vst.msk [vmem:[%s280 + $0x40] sm:$0xff] %vm700, %v979
      %1094 = vst.msk [vmem:[%s280 + $0x48] sm:$0xff] %vm700, %v994
      %1095 = vst.msk [vmem:[%s280 + $0x50] sm:$0xff] %vm700, %v1009
      %1096 = vst.msk [vmem:[%s280 + $0x58] sm:$0xff] %vm700, %v1024
      %1097 = vst.msk [vmem:[%s280 + $0x60] sm:$0xff] %vm700, %v1039
      %1098 = vst.msk [vmem:[%s280 + $0x68] sm:$0xff] %vm700, %v1054
      %1099 = vst.msk [vmem:[%s280 + $0x70] sm:$0xff] %vm700, %v1069
      %1100 = vst.msk [vmem:[%s280 + $0x78] sm:$0xff] %vm700, %v1084
      %s1101 = smul.u32 16, %s18
      %p1102 = scmp.lt.s32.totalorder %s1101, 31
      %s1103 = scalar_select %p1102, %s1101, 31
      %s1104 = smul.addr %s1103, 8
      %s1105 = scalar_lea.vmem %s7, %s1104
      // Predicated region
      $region49: #{tpu_custom_call.1} parent=47 // pred_check
        %p1106 = pneg %p188
      $region50: #{tpu_custom_call.1} parent=47 // pred_check_branch
        %1108 = sbr.rel (%p1106) target = $region52
      $region51: #{tpu_custom_call.1} parent=47 // pred_region
        %s1109 = smul.u32 16, %s18
      $region52: #{tpu_custom_call.1} parent=47 // pred_fallthru
        _
    $region48: #{tpu_custom_call.1} parent=5 // pred_fallthru
      _
    %p1110 = scmp.le.s32.totalorder 2, %s13
    // Predicated region
    $region53: #{tpu_custom_call.1} parent=5 // pred_check
      %p1111 = pneg %p1110
    $region54: #{tpu_custom_call.1} parent=5 // pred_check_branch
      %1113 = sbr.rel (%p1111) target = $region56
    $region55: #{tpu_custom_call.1} parent=5 // pred_region
      %s1114 = ssub.s32 %s13, 2
      // Predicated region
      $region57: #{tpu_custom_call.1} parent=55 // pred_check
        %p1115 = pneg %p194
      $region58: #{tpu_custom_call.1} parent=55 // pred_check_branch
        %1117 = sbr.rel (%p1115) target = $region60
      $region59: #{tpu_custom_call.1} parent=55 // pred_region
        %s1118 = smul.u32 16, %s19
        %p1119 = scmp.lt.s32.totalorder %s1118, 31
        %s1120 = scalar_select %p1119, %s1118, 31
        %s1121 = smul.addr %s1120, 8
        %s1122 = scalar_lea.vmem %s7, %s1121
      $region60: #{tpu_custom_call.1} parent=55 // pred_fallthru
        _
    $region56: #{tpu_custom_call.1} parent=5 // pred_fallthru
      _
  $region6: #{tpu_custom_call.1} parent=0 // loop_footer
    %s17 = sadd.s32 1, %s13
  $region7: #{tpu_custom_call.1} parent=0 // loop_footer_branch
    %12 = sbr.rel target = $region3
  $region8: #{tpu_custom_call.1} parent=0 // loop_exit
    _

</llo_original>
